<compile_context>
chip_gen: v5e
topology: v5e:2x2
jax: 0.10.0
libtpu: 0.0.40
codegen_flags: <defaults>
</compile_context>

<pallas_src>
import jax
import jax.numpy as jnp
from jax.experimental import pallas as pl


HP = 128   # hidden width padded to a full 128-lane vreg
DP = 128   # output width padded to 128 lanes (lane-dense stores)


def bayes_ensemble_kernel(x_ref, w1_ref, b1_ref, w2_ref, b2_ref, w3_ref, b3_ref,
                          out_ref):
    """Whole ensemble in ONE invocation (no grid).

    VMEM refs:
      x_ref  : (Np, Din)        shared input points, Din == 2
      w1_ref : (S, Din, HP)     b1_ref : (S, 1, HP)
      w2_ref : (S, HP, HP)      b2_ref : (S, 1, HP)
      w3_ref : (S, HP, DP)      b3_ref : (S, 1, DP)
      out_ref: (S, Np, DP)      lane-dense stacked output slab
    """
    x = x_ref[...]                           # (Np, Din) f32
    x0 = x[:, 0:1]                           # (Np, 1)
    x1 = x[:, 1:2]                           # (Np, 1)

    S = w1_ref.shape[0]
    for s in range(S):                       # tiny static S (=3): fully unrolled
        w1 = w1_ref[s]                       # (Din, HP)
        # Layer 1: K == 2 -> two VPU broadcast FMAs, skip the MXU entirely.
        h1 = jnp.tanh(x0 * w1[0:1, :] + x1 * w1[1:2, :] + b1_ref[s])      # (Np, HP)

        # Layers 2 and 3: full-lane MXU matmuls with f32 accumulation.
        h2 = jnp.tanh(jnp.dot(h1, w2_ref[s],
                              preferred_element_type=jnp.float32) + b2_ref[s])
        y = jnp.dot(h2, w3_ref[s],
                    preferred_element_type=jnp.float32) + b3_ref[s]        # (Np, DP)

        out_ref[s] = y                       # unmasked, lane-dense store


def _pad_last(a, target):
    return jnp.pad(a, [(0, 0)] * (a.ndim - 1) + [(0, target - a.shape[-1])])


def bayes_nn_forward(x, params):
    """Runs all n_samples ensemble members, returns stacked (S, N, Dout)."""
    S, Din, H = params["w1"].shape
    Dout = params["w3"].shape[2]
    N = x.shape[0]
    Np = ((N + 7) // 8) * 8                  # sublane-aligned row count

    # Layout plumbing only (zero padding): results on real rows/lanes are exact.
    x_p = jnp.pad(x, ((0, Np - N), (0, 0)))
    w1 = _pad_last(params["w1"], HP)                                         # (S, Din, HP)
    b1 = _pad_last(params["b1"], HP)                                         # (S, 1, HP)
    w2 = _pad_last(jnp.pad(params["w2"], ((0, 0), (0, HP - H), (0, 0))), HP) # (S, HP, HP)
    b2 = _pad_last(params["b2"], HP)                                         # (S, 1, HP)
    w3 = _pad_last(jnp.pad(params["w3"], ((0, 0), (0, HP - H), (0, 0))), DP) # (S, HP, DP)
    b3 = _pad_last(params["b3"], DP)                                         # (S, 1, DP)

    out = pl.pallas_call(
        bayes_ensemble_kernel,
        out_shape=jax.ShapeDtypeStruct((S, Np, DP), jnp.float32),
        # No grid: all operands are whole-array VMEM blocks (a few hundred KB).
    )(x_p, w1, b1, w2, b2, w3, b3)

    return out[:, :N, :Dout]                 # drop padded rows / lanes


def init_bayes_params(key, n_samples=3, din=2, hidden=32, dout=3,
                      beta_prior_shape=2.0, noise=0.001):
    """Per-sample parameters.

    Weights: kaiming-normal (std = sqrt(2 / fan_in)) as in init_normal().
    Biases : zeros.
    log_beta: one scalar per sample (Gamma(shape, rate=noise) sample, logged);
              a Parameter in the original module but unused by forward().
    """
    k1, k2, k3, kb = jax.random.split(key, 4)

    def kaiming(k, shape, fan_in):
        return (jax.random.normal(k, shape, dtype=jnp.float32)
                * jnp.sqrt(2.0 / fan_in))

    return {
        "w1": kaiming(k1, (n_samples, din, hidden), din),
        "b1": jnp.zeros((n_samples, 1, hidden), jnp.float32),
        "w2": kaiming(k2, (n_samples, hidden, hidden), hidden),
        "b2": jnp.zeros((n_samples, 1, hidden), jnp.float32),
        "w3": kaiming(k3, (n_samples, hidden, dout), hidden),
        "b3": jnp.zeros((n_samples, 1, dout), jnp.float32),
        "log_beta": jnp.log(
            jax.random.gamma(kb, beta_prior_shape, (n_samples,),
                             dtype=jnp.float32) / noise),
    }


def reference_forward(x, params):
    """Pure-JAX reference of the ensemble forward (for correctness check)."""
    def one(w1, b1, w2, b2, w3, b3):
        h1 = jnp.tanh(x @ w1 + b1)
        h2 = jnp.tanh(h1 @ w2 + b2)
        return h2 @ w3 + b3
    return jax.vmap(one)(params["w1"], params["b1"], params["w2"],
                         params["b2"], params["w3"], params["b3"])


if __name__ == "__main__":
    key = jax.random.PRNGKey(0)
    kx, kp = jax.random.split(key)

    n_samples = 3          # BayesNN default
    N = 16                 # number of (x, y) collocation points
    Din, H, Dout = 2, 32, 3

    x = jax.random.normal(kx, (N, Din), dtype=jnp.float32)
    params = init_bayes_params(kp, n_samples=n_samples, din=Din,
                               hidden=H, dout=Dout)

    out = jax.block_until_ready(bayes_nn_forward(x, params))   # (S, N, Dout)
    ref = jax.block_until_ready(reference_forward(x, params))

    assert out.shape == (n_samples, N, Dout)
    assert jnp.allclose(out, ref, atol=1e-5, rtol=1e-5)

    print("KERNEL_OK")
</pallas_src>

<mosaic_0001>
module attributes {stable_mosaic.version = 11 : i64} {
  func.func @bayes_ensemble_kernel(%arg0: memref<16x2xf32, #tpu.memory_space<vmem>>, %arg1: memref<3x2x128xf32, #tpu.memory_space<vmem>>, %arg2: memref<3x1x128xf32, #tpu.memory_space<vmem>>, %arg3: memref<3x128x128xf32, #tpu.memory_space<vmem>>, %arg4: memref<3x1x128xf32, #tpu.memory_space<vmem>>, %arg5: memref<3x128x128xf32, #tpu.memory_space<vmem>>, %arg6: memref<3x1x128xf32, #tpu.memory_space<vmem>>, %arg7: memref<3x16x128xf32, #tpu.memory_space<vmem>>) attributes {dimension_semantics = [], scalar_prefetch = 0 : i64, scratch_operands = 0 : i64, tpu.core_type = #tpu.core_type<tc>} {
    %c0 = arith.constant 0 : index
    %c0_0 = arith.constant 0 : index
    %0 = vector.load %arg0[%c0, %c0_0] : memref<16x2xf32, #tpu.memory_space<vmem>>, vector<16x2xf32>
    %1 = vector.extract_strided_slice %0 {offsets = [0, 0], sizes = [16, 1], strides = [1, 1]} : vector<16x2xf32> to vector<16x1xf32>
    %2 = vector.extract_strided_slice %0 {offsets = [0, 1], sizes = [16, 1], strides = [1, 1]} : vector<16x2xf32> to vector<16x1xf32>
    %c0_1 = arith.constant 0 : index
    %c0_2 = arith.constant 0 : index
    %c0_3 = arith.constant 0 : index
    %3 = vector.load %arg1[%c0_1, %c0_2, %c0_3] : memref<3x2x128xf32, #tpu.memory_space<vmem>>, vector<1x2x128xf32>
    %4 = vector.shape_cast %3 : vector<1x2x128xf32> to vector<2x128xf32>
    %5 = vector.extract_strided_slice %4 {offsets = [0, 0], sizes = [1, 128], strides = [1, 1]} : vector<2x128xf32> to vector<1x128xf32>
    %6 = vector.broadcast %1 : vector<16x1xf32> to vector<16x128xf32>
    %7 = vector.broadcast %5 : vector<1x128xf32> to vector<16x128xf32>
    %8 = arith.mulf %6, %7 : vector<16x128xf32>
    %9 = vector.extract_strided_slice %4 {offsets = [1, 0], sizes = [1, 128], strides = [1, 1]} : vector<2x128xf32> to vector<1x128xf32>
    %10 = vector.broadcast %2 : vector<16x1xf32> to vector<16x128xf32>
    %11 = vector.broadcast %9 : vector<1x128xf32> to vector<16x128xf32>
    %12 = arith.mulf %10, %11 : vector<16x128xf32>
    %13 = arith.addf %8, %12 : vector<16x128xf32>
    %c0_4 = arith.constant 0 : index
    %c0_5 = arith.constant 0 : index
    %c0_6 = arith.constant 0 : index
    %14 = vector.load %arg2[%c0_4, %c0_5, %c0_6] : memref<3x1x128xf32, #tpu.memory_space<vmem>>, vector<1x1x128xf32>
    %15 = vector.shape_cast %14 : vector<1x1x128xf32> to vector<1x128xf32>
    %16 = vector.broadcast %15 : vector<1x128xf32> to vector<16x128xf32>
    %17 = arith.addf %13, %16 : vector<16x128xf32>
    %18 = math.tanh %17 : vector<16x128xf32>
    %c0_7 = arith.constant 0 : index
    %c0_8 = arith.constant 0 : index
    %c0_9 = arith.constant 0 : index
    %19 = vector.load %arg3[%c0_7, %c0_8, %c0_9] : memref<3x128x128xf32, #tpu.memory_space<vmem>>, vector<1x128x128xf32>
    %20 = vector.shape_cast %19 : vector<1x128x128xf32> to vector<128x128xf32>
    %cst = arith.constant dense<0.000000e+00> : vector<16x128xf32>
    %21 = tpu.matmul %18, %20, %cst {dimension_numbers = #tpu.dot_dimension_numbers<[1], [0], [0], [1], [0, 0, 1, 1], [], []>} : vector<16x128xf32>, vector<128x128xf32>, vector<16x128xf32> -> vector<16x128xf32>
    %c0_10 = arith.constant 0 : index
    %c0_11 = arith.constant 0 : index
    %c0_12 = arith.constant 0 : index
    %22 = vector.load %arg4[%c0_10, %c0_11, %c0_12] : memref<3x1x128xf32, #tpu.memory_space<vmem>>, vector<1x1x128xf32>
    %23 = vector.shape_cast %22 : vector<1x1x128xf32> to vector<1x128xf32>
    %24 = vector.broadcast %23 : vector<1x128xf32> to vector<16x128xf32>
    %25 = arith.addf %21, %24 : vector<16x128xf32>
    %26 = math.tanh %25 : vector<16x128xf32>
    %c0_13 = arith.constant 0 : index
    %c0_14 = arith.constant 0 : index
    %c0_15 = arith.constant 0 : index
    %27 = vector.load %arg5[%c0_13, %c0_14, %c0_15] : memref<3x128x128xf32, #tpu.memory_space<vmem>>, vector<1x128x128xf32>
    %28 = vector.shape_cast %27 : vector<1x128x128xf32> to vector<128x128xf32>
    %cst_16 = arith.constant dense<0.000000e+00> : vector<16x128xf32>
    %29 = tpu.matmul %26, %28, %cst_16 {dimension_numbers = #tpu.dot_dimension_numbers<[1], [0], [0], [1], [0, 0, 1, 1], [], []>} : vector<16x128xf32>, vector<128x128xf32>, vector<16x128xf32> -> vector<16x128xf32>
    %c0_17 = arith.constant 0 : index
    %c0_18 = arith.constant 0 : index
    %c0_19 = arith.constant 0 : index
    %30 = vector.load %arg6[%c0_17, %c0_18, %c0_19] : memref<3x1x128xf32, #tpu.memory_space<vmem>>, vector<1x1x128xf32>
    %31 = vector.shape_cast %30 : vector<1x1x128xf32> to vector<1x128xf32>
    %32 = vector.broadcast %31 : vector<1x128xf32> to vector<16x128xf32>
    %33 = arith.addf %29, %32 : vector<16x128xf32>
    %c0_20 = arith.constant 0 : index
    %c0_21 = arith.constant 0 : index
    %c0_22 = arith.constant 0 : index
    %34 = vector.load %arg7[%c0_20, %c0_21, %c0_22] : memref<3x16x128xf32, #tpu.memory_space<vmem>>, vector<1x16x128xf32>
    %35 = vector.shape_cast %34 : vector<1x16x128xf32> to vector<16x128xf32>
    %36 = vector.shape_cast %33 : vector<16x128xf32> to vector<1x16x128xf32>
    tpu.vector_store %arg7[%c0_20, %c0_21, %c0_22], %36 {strides = array<i32>} : memref<3x16x128xf32, #tpu.memory_space<vmem>>, vector<1x16x128xf32>,
    %c1 = arith.constant 1 : index
    %c0_23 = arith.constant 0 : index
    %c0_24 = arith.constant 0 : index
    %37 = vector.load %arg1[%c1, %c0_23, %c0_24] : memref<3x2x128xf32, #tpu.memory_space<vmem>>, vector<1x2x128xf32>
    %38 = vector.shape_cast %37 : vector<1x2x128xf32> to vector<2x128xf32>
    %39 = vector.extract_strided_slice %38 {offsets = [0, 0], sizes = [1, 128], strides = [1, 1]} : vector<2x128xf32> to vector<1x128xf32>
    %40 = vector.broadcast %1 : vector<16x1xf32> to vector<16x128xf32>
    %41 = vector.broadcast %39 : vector<1x128xf32> to vector<16x128xf32>
    %42 = arith.mulf %40, %41 : vector<16x128xf32>
    %43 = vector.extract_strided_slice %38 {offsets = [1, 0], sizes = [1, 128], strides = [1, 1]} : vector<2x128xf32> to vector<1x128xf32>
    %44 = vector.broadcast %2 : vector<16x1xf32> to vector<16x128xf32>
    %45 = vector.broadcast %43 : vector<1x128xf32> to vector<16x128xf32>
    %46 = arith.mulf %44, %45 : vector<16x128xf32>
    %47 = arith.addf %42, %46 : vector<16x128xf32>
    %c1_25 = arith.constant 1 : index
    %c0_26 = arith.constant 0 : index
    %c0_27 = arith.constant 0 : index
    %48 = vector.load %arg2[%c1_25, %c0_26, %c0_27] : memref<3x1x128xf32, #tpu.memory_space<vmem>>, vector<1x1x128xf32>
    %49 = vector.shape_cast %48 : vector<1x1x128xf32> to vector<1x128xf32>
    %50 = vector.broadcast %49 : vector<1x128xf32> to vector<16x128xf32>
    %51 = arith.addf %47, %50 : vector<16x128xf32>
    %52 = math.tanh %51 : vector<16x128xf32>
    %c1_28 = arith.constant 1 : index
    %c0_29 = arith.constant 0 : index
    %c0_30 = arith.constant 0 : index
    %53 = vector.load %arg3[%c1_28, %c0_29, %c0_30] : memref<3x128x128xf32, #tpu.memory_space<vmem>>, vector<1x128x128xf32>
    %54 = vector.shape_cast %53 : vector<1x128x128xf32> to vector<128x128xf32>
    %cst_31 = arith.constant dense<0.000000e+00> : vector<16x128xf32>
    %55 = tpu.matmul %52, %54, %cst_31 {dimension_numbers = #tpu.dot_dimension_numbers<[1], [0], [0], [1], [0, 0, 1, 1], [], []>} : vector<16x128xf32>, vector<128x128xf32>, vector<16x128xf32> -> vector<16x128xf32>
    %c1_32 = arith.constant 1 : index
    %c0_33 = arith.constant 0 : index
    %c0_34 = arith.constant 0 : index
    %56 = vector.load %arg4[%c1_32, %c0_33, %c0_34] : memref<3x1x128xf32, #tpu.memory_space<vmem>>, vector<1x1x128xf32>
    %57 = vector.shape_cast %56 : vector<1x1x128xf32> to vector<1x128xf32>
    %58 = vector.broadcast %57 : vector<1x128xf32> to vector<16x128xf32>
    %59 = arith.addf %55, %58 : vector<16x128xf32>
    %60 = math.tanh %59 : vector<16x128xf32>
    %c1_35 = arith.constant 1 : index
    %c0_36 = arith.constant 0 : index
    %c0_37 = arith.constant 0 : index
    %61 = vector.load %arg5[%c1_35, %c0_36, %c0_37] : memref<3x128x128xf32, #tpu.memory_space<vmem>>, vector<1x128x128xf32>
    %62 = vector.shape_cast %61 : vector<1x128x128xf32> to vector<128x128xf32>
    %cst_38 = arith.constant dense<0.000000e+00> : vector<16x128xf32>
    %63 = tpu.matmul %60, %62, %cst_38 {dimension_numbers = #tpu.dot_dimension_numbers<[1], [0], [0], [1], [0, 0, 1, 1], [], []>} : vector<16x128xf32>, vector<128x128xf32>, vector<16x128xf32> -> vector<16x128xf32>
    %c1_39 = arith.constant 1 : index
    %c0_40 = arith.constant 0 : index
    %c0_41 = arith.constant 0 : index
    %64 = vector.load %arg6[%c1_39, %c0_40, %c0_41] : memref<3x1x128xf32, #tpu.memory_space<vmem>>, vector<1x1x128xf32>
    %65 = vector.shape_cast %64 : vector<1x1x128xf32> to vector<1x128xf32>
    %66 = vector.broadcast %65 : vector<1x128xf32> to vector<16x128xf32>
    %67 = arith.addf %63, %66 : vector<16x128xf32>
    %c1_42 = arith.constant 1 : index
    %c0_43 = arith.constant 0 : index
    %c0_44 = arith.constant 0 : index
    %68 = vector.load %arg7[%c1_42, %c0_43, %c0_44] : memref<3x16x128xf32, #tpu.memory_space<vmem>>, vector<1x16x128xf32>
    %69 = vector.shape_cast %68 : vector<1x16x128xf32> to vector<16x128xf32>
    %70 = vector.shape_cast %67 : vector<16x128xf32> to vector<1x16x128xf32>
    tpu.vector_store %arg7[%c1_42, %c0_43, %c0_44], %70 {strides = array<i32>} : memref<3x16x128xf32, #tpu.memory_space<vmem>>, vector<1x16x128xf32>,
    %c2 = arith.constant 2 : index
    %c0_45 = arith.constant 0 : index
    %c0_46 = arith.constant 0 : index
    %71 = vector.load %arg1[%c2, %c0_45, %c0_46] : memref<3x2x128xf32, #tpu.memory_space<vmem>>, vector<1x2x128xf32>
    %72 = vector.shape_cast %71 : vector<1x2x128xf32> to vector<2x128xf32>
    %73 = vector.extract_strided_slice %72 {offsets = [0, 0], sizes = [1, 128], strides = [1, 1]} : vector<2x128xf32> to vector<1x128xf32>
    %74 = vector.broadcast %1 : vector<16x1xf32> to vector<16x128xf32>
    %75 = vector.broadcast %73 : vector<1x128xf32> to vector<16x128xf32>
    %76 = arith.mulf %74, %75 : vector<16x128xf32>
    %77 = vector.extract_strided_slice %72 {offsets = [1, 0], sizes = [1, 128], strides = [1, 1]} : vector<2x128xf32> to vector<1x128xf32>
    %78 = vector.broadcast %2 : vector<16x1xf32> to vector<16x128xf32>
    %79 = vector.broadcast %77 : vector<1x128xf32> to vector<16x128xf32>
    %80 = arith.mulf %78, %79 : vector<16x128xf32>
    %81 = arith.addf %76, %80 : vector<16x128xf32>
    %c2_47 = arith.constant 2 : index
    %c0_48 = arith.constant 0 : index
    %c0_49 = arith.constant 0 : index
    %82 = vector.load %arg2[%c2_47, %c0_48, %c0_49] : memref<3x1x128xf32, #tpu.memory_space<vmem>>, vector<1x1x128xf32>
    %83 = vector.shape_cast %82 : vector<1x1x128xf32> to vector<1x128xf32>
    %84 = vector.broadcast %83 : vector<1x128xf32> to vector<16x128xf32>
    %85 = arith.addf %81, %84 : vector<16x128xf32>
    %86 = math.tanh %85 : vector<16x128xf32>
    %c2_50 = arith.constant 2 : index
    %c0_51 = arith.constant 0 : index
    %c0_52 = arith.constant 0 : index
    %87 = vector.load %arg3[%c2_50, %c0_51, %c0_52] : memref<3x128x128xf32, #tpu.memory_space<vmem>>, vector<1x128x128xf32>
    %88 = vector.shape_cast %87 : vector<1x128x128xf32> to vector<128x128xf32>
    %cst_53 = arith.constant dense<0.000000e+00> : vector<16x128xf32>
    %89 = tpu.matmul %86, %88, %cst_53 {dimension_numbers = #tpu.dot_dimension_numbers<[1], [0], [0], [1], [0, 0, 1, 1], [], []>} : vector<16x128xf32>, vector<128x128xf32>, vector<16x128xf32> -> vector<16x128xf32>
    %c2_54 = arith.constant 2 : index
    %c0_55 = arith.constant 0 : index
    %c0_56 = arith.constant 0 : index
    %90 = vector.load %arg4[%c2_54, %c0_55, %c0_56] : memref<3x1x128xf32, #tpu.memory_space<vmem>>, vector<1x1x128xf32>
    %91 = vector.shape_cast %90 : vector<1x1x128xf32> to vector<1x128xf32>
    %92 = vector.broadcast %91 : vector<1x128xf32> to vector<16x128xf32>
    %93 = arith.addf %89, %92 : vector<16x128xf32>
    %94 = math.tanh %93 : vector<16x128xf32>
    %c2_57 = arith.constant 2 : index
    %c0_58 = arith.constant 0 : index
    %c0_59 = arith.constant 0 : index
    %95 = vector.load %arg5[%c2_57, %c0_58, %c0_59] : memref<3x128x128xf32, #tpu.memory_space<vmem>>, vector<1x128x128xf32>
    %96 = vector.shape_cast %95 : vector<1x128x128xf32> to vector<128x128xf32>
    %cst_60 = arith.constant dense<0.000000e+00> : vector<16x128xf32>
    %97 = tpu.matmul %94, %96, %cst_60 {dimension_numbers = #tpu.dot_dimension_numbers<[1], [0], [0], [1], [0, 0, 1, 1], [], []>} : vector<16x128xf32>, vector<128x128xf32>, vector<16x128xf32> -> vector<16x128xf32>
    %c2_61 = arith.constant 2 : index
    %c0_62 = arith.constant 0 : index
    %c0_63 = arith.constant 0 : index
    %98 = vector.load %arg6[%c2_61, %c0_62, %c0_63] : memref<3x1x128xf32, #tpu.memory_space<vmem>>, vector<1x1x128xf32>
    %99 = vector.shape_cast %98 : vector<1x1x128xf32> to vector<1x128xf32>
    %100 = vector.broadcast %99 : vector<1x128xf32> to vector<16x128xf32>
    %101 = arith.addf %97, %100 : vector<16x128xf32>
    %c2_64 = arith.constant 2 : index
    %c0_65 = arith.constant 0 : index
    %c0_66 = arith.constant 0 : index
    %102 = vector.load %arg7[%c2_64, %c0_65, %c0_66] : memref<3x16x128xf32, #tpu.memory_space<vmem>>, vector<1x16x128xf32>
    %103 = vector.shape_cast %102 : vector<1x16x128xf32> to vector<16x128xf32>
    %104 = vector.shape_cast %101 : vector<16x128xf32> to vector<1x16x128xf32>
    tpu.vector_store %arg7[%c2_64, %c0_65, %c0_66], %104 {strides = array<i32>} : memref<3x16x128xf32, #tpu.memory_space<vmem>>, vector<1x16x128xf32>,
    return
  }
}

</mosaic_0001>

<llo_original>
// kernel: tpu_custom_call.1
$region0: #{tpu_custom_call.1}
  #allocation0 [shape = 'u32[]', space=smem, size = 0x4, offset = 0x4, fixed_abs, tag = 'smem constant byte address 0x4 - core index']
  #allocation1 [shape = 'u32[72,128]{1,0:T(1,128)}', space=vmem, size = 0x9000, scoped, tag = 'internal scratch']
  %s0 = inlined_call_operand.vmem [shape: f32[16,2], index: 0, kind: input, shape index: {}]
  %s1 = inlined_call_operand.vmem [shape: f32[3,2,128], index: 1, kind: input, shape index: {}]
  %s2 = inlined_call_operand.vmem [shape: f32[3,1,128], index: 2, kind: input, shape index: {}]
  %s3 = inlined_call_operand.hbm [shape: f32[3,128,128], index: 3, kind: input, shape index: {}]
  %s4 = inlined_call_operand.vmem [shape: f32[3,1,128], index: 4, kind: input, shape index: {}]
  %s5 = inlined_call_operand.hbm [shape: f32[3,128,128], index: 5, kind: input, shape index: {}]
  %s6 = inlined_call_operand.vmem [shape: f32[3,1,128], index: 6, kind: input, shape index: {}]
  %s7 = inlined_call_operand.hbm [shape: f32[3,16,128], index: 7, kind: output, shape index: {}]
  %s8 = sld [smem:[#allocation0]]
  $region46: #{tpu_custom_call.1} parent=0
    _
  %s10 = ssub.s32 1, %s8
  %s11 = scalar_select 0, %s10, %s8
  $region1: #{tpu_custom_call.1} parent=0
    #allocation2 [shape = 'u8[196608]{0}', space=vmem, size = 0x30000, scoped, tag = 'input window, operand 3, single buffered']
    #allocation3 [shape = 's32[1]{0}', space=sflag, size = 0x4, scoped, tag = 'scoped memory for tpu_custom_call.1']
    #allocation4 [shape = 's32[1]{0}', space=sflag, size = 0x4, scoped, tag = 'scoped memory for tpu_custom_call.1']
    #allocation5 [shape = 'u8[196608]{0}', space=vmem, size = 0x30000, scoped, tag = 'input window, operand 5, single buffered']
    #allocation6 [shape = 's32[1]{0}', space=sflag, size = 0x4, scoped, tag = 'scoped memory for tpu_custom_call.1']
    #allocation7 [shape = 'u8[24576]{0}', space=vmem, size = 0x6000, scoped, tag = 'output window, operand 0, single buffered']
    %12 = vsyncpa [#allocation3], 0
    %13 = vsyncpa [#allocation6], 0
    %14 = vsyncpa [#allocation4], 0
    // Predicated region
    $region2: #{tpu_custom_call.1} parent=1 // pred_check
      _
    $region3: #{tpu_custom_call.1} parent=1 // pred_check_branch
      %16 = sbr.rel (0) target = $region5
    $region4: #{tpu_custom_call.1} parent=1 // pred_region
      _
    $region5: #{tpu_custom_call.1} parent=1 // pred_fallthru
      _
    // Predicated region
    $region6: #{tpu_custom_call.1} parent=1 // pred_check
      _
    $region7: #{tpu_custom_call.1} parent=1 // pred_check_branch
      %18 = sbr.rel (0) target = $region9
    $region8: #{tpu_custom_call.1} parent=1 // pred_region
      _
    $region9: #{tpu_custom_call.1} parent=1 // pred_fallthru
      _
    // Predicated region
    $region10: #{tpu_custom_call.1} parent=1 // pred_check
      _
    $region11: #{tpu_custom_call.1} parent=1 // pred_check_branch
      %20 = sbr.rel (0) target = $region13
    $region12: #{tpu_custom_call.1} parent=1 // pred_region
      _
    $region13: #{tpu_custom_call.1} parent=1 // pred_fallthru
      _
    // Predicated region
    $region14: #{tpu_custom_call.1} parent=1 // pred_check
      _
    $region15: #{tpu_custom_call.1} parent=1 // pred_check_branch
      %22 = sbr.rel (0) target = $region17
    $region16: #{tpu_custom_call.1} parent=1 // pred_region
      %24 = vsyncadd [#allocation3], 0
      %s25 = sshll.u32 %s3, 4
      %s26 = int_to_ptr.hbm [resolvable:$true] %s25
      %s27 = sshll.u32 [#allocation2], 4
      %s28 = int_to_ptr.vmem [resolvable:$true] %s27
      %33 = dma.hbm_to_vmem [thread:$0]  %s26, 6144, %s28, [#allocation3], 128, 128, 8
    $region17: #{tpu_custom_call.1} parent=1 // pred_fallthru
      _
    // Predicated region
    $region18: #{tpu_custom_call.1} parent=1 // pred_check
      _
    $region19: #{tpu_custom_call.1} parent=1 // pred_check_branch
      %35 = sbr.rel (0) target = $region21
    $region20: #{tpu_custom_call.1} parent=1 // pred_region
      _
    $region21: #{tpu_custom_call.1} parent=1 // pred_fallthru
      _
    // Predicated region
    $region22: #{tpu_custom_call.1} parent=1 // pred_check
      _
    $region23: #{tpu_custom_call.1} parent=1 // pred_check_branch
      %37 = sbr.rel (0) target = $region25
    $region24: #{tpu_custom_call.1} parent=1 // pred_region
      %39 = vsyncadd [#allocation6], 0
      %s40 = sshll.u32 %s5, 4
      %s41 = int_to_ptr.hbm [resolvable:$true] %s40
      %s42 = sshll.u32 [#allocation5], 4
      %s43 = int_to_ptr.vmem [resolvable:$true] %s42
      %48 = dma.hbm_to_vmem [thread:$0]  %s41, 6144, %s43, [#allocation6], 128, 128, 8
    $region25: #{tpu_custom_call.1} parent=1 // pred_fallthru
      _
    // Predicated region
    $region26: #{tpu_custom_call.1} parent=1 // pred_check
      _
    $region27: #{tpu_custom_call.1} parent=1 // pred_check_branch
      %50 = sbr.rel (0) target = $region29
    $region28: #{tpu_custom_call.1} parent=1 // pred_region
      _
    $region29: #{tpu_custom_call.1} parent=1 // pred_fallthru
      _
    // Predicated region
    $region30: #{tpu_custom_call.1} parent=1 // pred_check
      _
    $region31: #{tpu_custom_call.1} parent=1 // pred_check_branch
      %52 = sbr.rel (0) target = $region33
    $region32: #{tpu_custom_call.1} parent=1 // pred_region
      %54 = dma.done [#allocation3], 6144
    $region33: #{tpu_custom_call.1} parent=1 // pred_fallthru
      _
    // Predicated region
    $region34: #{tpu_custom_call.1} parent=1 // pred_check
      _
    $region35: #{tpu_custom_call.1} parent=1 // pred_check_branch
      %56 = sbr.rel (0) target = $region37
    $region36: #{tpu_custom_call.1} parent=1 // pred_region
      %58 = dma.done [#allocation6], 6144
    $region37: #{tpu_custom_call.1} parent=1 // pred_fallthru
      _
    %v59 = vld [vmem:[%s0] sm:$0xff]
    %v60 = vld [vmem:[%s0 + $0x8] sm:$0xff]
    %v61 = vld [vmem:[%s1] sm:$0x3]
    %63 = vset.pattern.permute.xlu0 0
    %64 = vperm.xlu0 %63, %v59
    %v65 = vpop.permute.xlu0 %64
    %68 = vset.pattern.permute.xlu0 0
    %69 = vperm.xlu0 %68, %v60
    %v70 = vpop.permute.xlu0 %69
    %v72 = vperm.slane %v61, 0
    %v73 = vmul.f32 %v65, %v72
    %v74 = vmul.f32 %v70, %v72
    %75 = vset.pattern.permute.xlu0 1
    %76 = vperm.xlu0 %75, %v59
    %v77 = vpop.permute.xlu0 %76
    %79 = vset.pattern.permute.xlu0 1
    %80 = vperm.xlu0 %79, %v60
    %v81 = vpop.permute.xlu0 %80
    %v83 = vperm.slane %v61, 1
    %v84 = vmul.f32 %v77, %v83
    %v85 = vmul.f32 %v81, %v83
    %v86 = vadd.f32 %v73, %v84
    %v87 = vadd.f32 %v74, %v85
    %v88 = vld [vmem:[%s2] sm:$0x1]
    %v90 = vperm.slane %v88, 0
    %v92 = vadd.f32 %v86, %v90
    %v93 = vadd.f32 %v87, %v90
    %v94 = vtanh.pop %v92
    %v95 = vtanh.pop %v93
    %v96 = vld [vmem:[#allocation2] sm:$0xff]
    %v97 = vld [vmem:[#allocation2 + $0x8] sm:$0xff]
    %v98 = vld [vmem:[#allocation2 + $0x10] sm:$0xff]
    %v99 = vld [vmem:[#allocation2 + $0x18] sm:$0xff]
    %v100 = vld [vmem:[#allocation2 + $0x20] sm:$0xff]
    %v101 = vld [vmem:[#allocation2 + $0x28] sm:$0xff]
    %v102 = vld [vmem:[#allocation2 + $0x30] sm:$0xff]
    %v103 = vld [vmem:[#allocation2 + $0x38] sm:$0xff]
    %v104 = vld [vmem:[#allocation2 + $0x40] sm:$0xff]
    %v105 = vld [vmem:[#allocation2 + $0x48] sm:$0xff]
    %v106 = vld [vmem:[#allocation2 + $0x50] sm:$0xff]
    %v107 = vld [vmem:[#allocation2 + $0x58] sm:$0xff]
    %v108 = vld [vmem:[#allocation2 + $0x60] sm:$0xff]
    %v109 = vld [vmem:[#allocation2 + $0x68] sm:$0xff]
    %v110 = vld [vmem:[#allocation2 + $0x70] sm:$0xff]
    %v111 = vld [vmem:[#allocation2 + $0x78] sm:$0xff]
    %v112 = vld [vmem:[%s4] sm:$0x1]
    %v114 = vperm.slane %v112, 0
    %116 = vmatpush.msra.mxu0 %v111
    %117 = vmatpush.msra.mxu0 %v110
    %118 = vmatpush.msra.mxu0 %v109
    %119 = vmatpush.msra.mxu0 %v108
    %120 = vmatpush.msra.mxu0 %v107
    %121 = vmatpush.msra.mxu0 %v106
    %122 = vmatpush.msra.mxu0 %v105
    %123 = vmatpush.msra.mxu0 %v104
    %124 = vmatpush.msra.mxu0 %v103
    %125 = vmatpush.msra.mxu0 %v102
    %126 = vmatpush.msra.mxu0 %v101
    %127 = vmatpush.msra.mxu0 %v100
    %128 = vmatpush.msra.mxu0 %v99
    %129 = vmatpush.msra.mxu0 %v98
    %130 = vmatpush.msra.mxu0 %v97
    %131 = vmatpush.msra.mxu0 %v96
    %132 = vmatmul.f32.gmra.mxu0 %v94
    %v133 = vpop.f32.mrf.mxu0
    %v134 = vadd.f32 %v114, %v133
    %135 = vmatmul.f32.gmra.mxu0 %v95
    %v136 = vpop.f32.mrf.mxu0
    %v137 = vadd.f32 %v114, %v136
    %138 = vdwg.mxu0
    %v139 = vtanh.pop %v134
    %v140 = vtanh.pop %v137
    %v141 = vld [vmem:[#allocation5] sm:$0xff]
    %v142 = vld [vmem:[#allocation5 + $0x8] sm:$0xff]
    %v143 = vld [vmem:[#allocation5 + $0x10] sm:$0xff]
    %v144 = vld [vmem:[#allocation5 + $0x18] sm:$0xff]
    %v145 = vld [vmem:[#allocation5 + $0x20] sm:$0xff]
    %v146 = vld [vmem:[#allocation5 + $0x28] sm:$0xff]
    %v147 = vld [vmem:[#allocation5 + $0x30] sm:$0xff]
    %v148 = vld [vmem:[#allocation5 + $0x38] sm:$0xff]
    %v149 = vld [vmem:[#allocation5 + $0x40] sm:$0xff]
    %v150 = vld [vmem:[#allocation5 + $0x48] sm:$0xff]
    %v151 = vld [vmem:[#allocation5 + $0x50] sm:$0xff]
    %v152 = vld [vmem:[#allocation5 + $0x58] sm:$0xff]
    %v153 = vld [vmem:[#allocation5 + $0x60] sm:$0xff]
    %v154 = vld [vmem:[#allocation5 + $0x68] sm:$0xff]
    %v155 = vld [vmem:[#allocation5 + $0x70] sm:$0xff]
    %v156 = vld [vmem:[#allocation5 + $0x78] sm:$0xff]
    %v157 = vld [vmem:[%s6] sm:$0x1]
    %v159 = vperm.slane %v157, 0
    %161 = vmatpush.msra.mxu0 %v156
    %162 = vmatpush.msra.mxu0 %v155
    %163 = vmatpush.msra.mxu0 %v154
    %164 = vmatpush.msra.mxu0 %v153
    %165 = vmatpush.msra.mxu0 %v152
    %166 = vmatpush.msra.mxu0 %v151
    %167 = vmatpush.msra.mxu0 %v150
    %168 = vmatpush.msra.mxu0 %v149
    %169 = vmatpush.msra.mxu0 %v148
    %170 = vmatpush.msra.mxu0 %v147
    %171 = vmatpush.msra.mxu0 %v146
    %172 = vmatpush.msra.mxu0 %v145
    %173 = vmatpush.msra.mxu0 %v144
    %174 = vmatpush.msra.mxu0 %v143
    %175 = vmatpush.msra.mxu0 %v142
    %176 = vmatpush.msra.mxu0 %v141
    %177 = vmatmul.f32.gmra.mxu0 %v139
    %v178 = vpop.f32.mrf.mxu0
    %v179 = vadd.f32 %v159, %v178
    %180 = vmatmul.f32.gmra.mxu0 %v140
    %v181 = vpop.f32.mrf.mxu0
    %v182 = vadd.f32 %v159, %v181
    %183 = vdwg.mxu0
    %184 = vst [vmem:[#allocation7] sm:$0xff] %v179
    %185 = vst [vmem:[#allocation7 + $0x8] sm:$0xff] %v182
    %s186 = scalar_lea.vmem %s1, 2
    %v187 = vld [vmem:[%s186] sm:$0x3]
    %v188 = vperm.slane %v187, 0
    %v189 = vmul.f32 %v65, %v188
    %v190 = vmul.f32 %v70, %v188
    %v191 = vperm.slane %v187, 1
    %v192 = vmul.f32 %v77, %v191
    %v193 = vmul.f32 %v81, %v191
    %v194 = vadd.f32 %v189, %v192
    %v195 = vadd.f32 %v190, %v193
    %s196 = scalar_lea.vmem %s2, 1
    %v197 = vld [vmem:[%s196] sm:$0x1]
    %v199 = vperm.slane %v197, 0
    %v201 = vadd.f32 %v194, %v199
    %v202 = vadd.f32 %v195, %v199
    %v203 = vtanh.pop %v201
    %v204 = vtanh.pop %v202
    %s205 = scalar_lea.vmem [#allocation2], 128
    %v206 = vld [vmem:[%s205] sm:$0xff]
    %v207 = vld [vmem:[%s205 + $0x8] sm:$0xff]
    %v208 = vld [vmem:[%s205 + $0x10] sm:$0xff]
    %v209 = vld [vmem:[%s205 + $0x18] sm:$0xff]
    %v210 = vld [vmem:[%s205 + $0x20] sm:$0xff]
    %v211 = vld [vmem:[%s205 + $0x28] sm:$0xff]
    %v212 = vld [vmem:[%s205 + $0x30] sm:$0xff]
    %v213 = vld [vmem:[%s205 + $0x38] sm:$0xff]
    %v214 = vld [vmem:[%s205 + $0x40] sm:$0xff]
    %v215 = vld [vmem:[%s205 + $0x48] sm:$0xff]
    %v216 = vld [vmem:[%s205 + $0x50] sm:$0xff]
    %v217 = vld [vmem:[%s205 + $0x58] sm:$0xff]
    %v218 = vld [vmem:[%s205 + $0x60] sm:$0xff]
    %v219 = vld [vmem:[%s205 + $0x68] sm:$0xff]
    %v220 = vld [vmem:[%s205 + $0x70] sm:$0xff]
    %v221 = vld [vmem:[%s205 + $0x78] sm:$0xff]
    %s222 = scalar_lea.vmem %s4, 1
    %v223 = vld [vmem:[%s222] sm:$0x1]
    %v225 = vperm.slane %v223, 0
    %227 = vmatpush.msra.mxu0 %v221
    %228 = vmatpush.msra.mxu0 %v220
    %229 = vmatpush.msra.mxu0 %v219
    %230 = vmatpush.msra.mxu0 %v218
    %231 = vmatpush.msra.mxu0 %v217
    %232 = vmatpush.msra.mxu0 %v216
    %233 = vmatpush.msra.mxu0 %v215
    %234 = vmatpush.msra.mxu0 %v214
    %235 = vmatpush.msra.mxu0 %v213
    %236 = vmatpush.msra.mxu0 %v212
    %237 = vmatpush.msra.mxu0 %v211
    %238 = vmatpush.msra.mxu0 %v210
    %239 = vmatpush.msra.mxu0 %v209
    %240 = vmatpush.msra.mxu0 %v208
    %241 = vmatpush.msra.mxu0 %v207
    %242 = vmatpush.msra.mxu0 %v206
    %243 = vmatmul.f32.gmra.mxu0 %v203
    %v244 = vpop.f32.mrf.mxu0
    %v245 = vadd.f32 %v225, %v244
    %246 = vmatmul.f32.gmra.mxu0 %v204
    %v247 = vpop.f32.mrf.mxu0
    %v248 = vadd.f32 %v225, %v247
    %249 = vdwg.mxu0
    %v250 = vtanh.pop %v245
    %v251 = vtanh.pop %v248
    %s252 = scalar_lea.vmem [#allocation5], 128
    %v253 = vld [vmem:[%s252] sm:$0xff]
    %v254 = vld [vmem:[%s252 + $0x8] sm:$0xff]
    %v255 = vld [vmem:[%s252 + $0x10] sm:$0xff]
    %v256 = vld [vmem:[%s252 + $0x18] sm:$0xff]
    %v257 = vld [vmem:[%s252 + $0x20] sm:$0xff]
    %v258 = vld [vmem:[%s252 + $0x28] sm:$0xff]
    %v259 = vld [vmem:[%s252 + $0x30] sm:$0xff]
    %v260 = vld [vmem:[%s252 + $0x38] sm:$0xff]
    %v261 = vld [vmem:[%s252 + $0x40] sm:$0xff]
    %v262 = vld [vmem:[%s252 + $0x48] sm:$0xff]
    %v263 = vld [vmem:[%s252 + $0x50] sm:$0xff]
    %v264 = vld [vmem:[%s252 + $0x58] sm:$0xff]
    %v265 = vld [vmem:[%s252 + $0x60] sm:$0xff]
    %v266 = vld [vmem:[%s252 + $0x68] sm:$0xff]
    %v267 = vld [vmem:[%s252 + $0x70] sm:$0xff]
    %v268 = vld [vmem:[%s252 + $0x78] sm:$0xff]
    %s269 = scalar_lea.vmem %s6, 1
    %v270 = vld [vmem:[%s269] sm:$0x1]
    %v272 = vperm.slane %v270, 0
    %274 = vmatpush.msra.mxu0 %v268
    %275 = vmatpush.msra.mxu0 %v267
    %276 = vmatpush.msra.mxu0 %v266
    %277 = vmatpush.msra.mxu0 %v265
    %278 = vmatpush.msra.mxu0 %v264
    %279 = vmatpush.msra.mxu0 %v263
    %280 = vmatpush.msra.mxu0 %v262
    %281 = vmatpush.msra.mxu0 %v261
    %282 = vmatpush.msra.mxu0 %v260
    %283 = vmatpush.msra.mxu0 %v259
    %284 = vmatpush.msra.mxu0 %v258
    %285 = vmatpush.msra.mxu0 %v257
    %286 = vmatpush.msra.mxu0 %v256
    %287 = vmatpush.msra.mxu0 %v255
    %288 = vmatpush.msra.mxu0 %v254
    %289 = vmatpush.msra.mxu0 %v253
    %290 = vmatmul.f32.gmra.mxu0 %v250
    %v291 = vpop.f32.mrf.mxu0
    %v292 = vadd.f32 %v272, %v291
    %293 = vmatmul.f32.gmra.mxu0 %v251
    %v294 = vpop.f32.mrf.mxu0
    %v295 = vadd.f32 %v272, %v294
    %296 = vdwg.mxu0
    %s297 = scalar_lea.vmem [#allocation7], 16
    %298 = vst [vmem:[%s297] sm:$0xff] %v292
    %299 = vst [vmem:[%s297 + $0x8] sm:$0xff] %v295
    %s300 = scalar_lea.vmem %s1, 4
    %v301 = vld [vmem:[%s300] sm:$0x3]
    %v302 = vperm.slane %v301, 0
    %v303 = vmul.f32 %v65, %v302
    %v304 = vmul.f32 %v70, %v302
    %v305 = vperm.slane %v301, 1
    %v306 = vmul.f32 %v77, %v305
    %v307 = vmul.f32 %v81, %v305
    %v308 = vadd.f32 %v303, %v306
    %v309 = vadd.f32 %v304, %v307
    %s310 = scalar_lea.vmem %s2, 2
    %v311 = vld [vmem:[%s310] sm:$0x1]
    %v313 = vperm.slane %v311, 0
    %v315 = vadd.f32 %v308, %v313
    %v316 = vadd.f32 %v309, %v313
    %v317 = vtanh.pop %v315
    %v318 = vtanh.pop %v316
    %s319 = scalar_lea.vmem [#allocation2], 256
    %v320 = vld [vmem:[%s319] sm:$0xff]
    %v321 = vld [vmem:[%s319 + $0x8] sm:$0xff]
    %v322 = vld [vmem:[%s319 + $0x10] sm:$0xff]
    %v323 = vld [vmem:[%s319 + $0x18] sm:$0xff]
    %v324 = vld [vmem:[%s319 + $0x20] sm:$0xff]
    %v325 = vld [vmem:[%s319 + $0x28] sm:$0xff]
    %v326 = vld [vmem:[%s319 + $0x30] sm:$0xff]
    %v327 = vld [vmem:[%s319 + $0x38] sm:$0xff]
    %v328 = vld [vmem:[%s319 + $0x40] sm:$0xff]
    %v329 = vld [vmem:[%s319 + $0x48] sm:$0xff]
    %v330 = vld [vmem:[%s319 + $0x50] sm:$0xff]
    %v331 = vld [vmem:[%s319 + $0x58] sm:$0xff]
    %v332 = vld [vmem:[%s319 + $0x60] sm:$0xff]
    %v333 = vld [vmem:[%s319 + $0x68] sm:$0xff]
    %v334 = vld [vmem:[%s319 + $0x70] sm:$0xff]
    %v335 = vld [vmem:[%s319 + $0x78] sm:$0xff]
    %s336 = scalar_lea.vmem %s4, 2
    %v337 = vld [vmem:[%s336] sm:$0x1]
    %v339 = vperm.slane %v337, 0
    %341 = vmatpush.msra.mxu0 %v335
    %342 = vmatpush.msra.mxu0 %v334
    %343 = vmatpush.msra.mxu0 %v333
    %344 = vmatpush.msra.mxu0 %v332
    %345 = vmatpush.msra.mxu0 %v331
    %346 = vmatpush.msra.mxu0 %v330
    %347 = vmatpush.msra.mxu0 %v329
    %348 = vmatpush.msra.mxu0 %v328
    %349 = vmatpush.msra.mxu0 %v327
    %350 = vmatpush.msra.mxu0 %v326
    %351 = vmatpush.msra.mxu0 %v325
    %352 = vmatpush.msra.mxu0 %v324
    %353 = vmatpush.msra.mxu0 %v323
    %354 = vmatpush.msra.mxu0 %v322
    %355 = vmatpush.msra.mxu0 %v321
    %356 = vmatpush.msra.mxu0 %v320
    %357 = vmatmul.f32.gmra.mxu0 %v317
    %v358 = vpop.f32.mrf.mxu0
    %v359 = vadd.f32 %v339, %v358
    %360 = vmatmul.f32.gmra.mxu0 %v318
    %v361 = vpop.f32.mrf.mxu0
    %v362 = vadd.f32 %v339, %v361
    %363 = vdwg.mxu0
    %v364 = vtanh.pop %v359
    %v365 = vtanh.pop %v362
    %s366 = scalar_lea.vmem [#allocation5], 256
    %v367 = vld [vmem:[%s366] sm:$0xff]
    %v368 = vld [vmem:[%s366 + $0x8] sm:$0xff]
    %v369 = vld [vmem:[%s366 + $0x10] sm:$0xff]
    %v370 = vld [vmem:[%s366 + $0x18] sm:$0xff]
    %v371 = vld [vmem:[%s366 + $0x20] sm:$0xff]
    %v372 = vld [vmem:[%s366 + $0x28] sm:$0xff]
    %v373 = vld [vmem:[%s366 + $0x30] sm:$0xff]
    %v374 = vld [vmem:[%s366 + $0x38] sm:$0xff]
    %v375 = vld [vmem:[%s366 + $0x40] sm:$0xff]
    %v376 = vld [vmem:[%s366 + $0x48] sm:$0xff]
    %v377 = vld [vmem:[%s366 + $0x50] sm:$0xff]
    %v378 = vld [vmem:[%s366 + $0x58] sm:$0xff]
    %v379 = vld [vmem:[%s366 + $0x60] sm:$0xff]
    %v380 = vld [vmem:[%s366 + $0x68] sm:$0xff]
    %v381 = vld [vmem:[%s366 + $0x70] sm:$0xff]
    %v382 = vld [vmem:[%s366 + $0x78] sm:$0xff]
    %s383 = scalar_lea.vmem %s6, 2
    %v384 = vld [vmem:[%s383] sm:$0x1]
    %v386 = vperm.slane %v384, 0
    %388 = vmatpush.msra.mxu0 %v382
    %389 = vmatpush.msra.mxu0 %v381
    %390 = vmatpush.msra.mxu0 %v380
    %391 = vmatpush.msra.mxu0 %v379
    %392 = vmatpush.msra.mxu0 %v378
    %393 = vmatpush.msra.mxu0 %v377
    %394 = vmatpush.msra.mxu0 %v376
    %395 = vmatpush.msra.mxu0 %v375
    %396 = vmatpush.msra.mxu0 %v374
    %397 = vmatpush.msra.mxu0 %v373
    %398 = vmatpush.msra.mxu0 %v372
    %399 = vmatpush.msra.mxu0 %v371
    %400 = vmatpush.msra.mxu0 %v370
    %401 = vmatpush.msra.mxu0 %v369
    %402 = vmatpush.msra.mxu0 %v368
    %403 = vmatpush.msra.mxu0 %v367
    %404 = vmatmul.f32.gmra.mxu0 %v364
    %v405 = vpop.f32.mrf.mxu0
    %v406 = vadd.f32 %v386, %v405
    %407 = vmatmul.f32.gmra.mxu0 %v365
    %v408 = vpop.f32.mrf.mxu0
    %v409 = vadd.f32 %v386, %v408
    %410 = vdwg.mxu0
    %s411 = scalar_lea.vmem [#allocation7], 32
    %412 = vst [vmem:[%s411] sm:$0xff] %v406
    %413 = vst [vmem:[%s411 + $0x8] sm:$0xff] %v409
    // Predicated region
    $region38: #{tpu_custom_call.1} parent=1 // pred_check
      _
    $region39: #{tpu_custom_call.1} parent=1 // pred_check_branch
      %415 = sbr.rel (0) target = $region41
    $region40: #{tpu_custom_call.1} parent=1 // pred_region
      %417 = vsyncadd [#allocation4], 0
      %s418 = sshll.u32 [#allocation7], 4
      %s419 = int_to_ptr.vmem [resolvable:$true] %s418
      %s420 = sshll.u32 %s7, 4
      %s421 = int_to_ptr.hbm [resolvable:$true] %s420
      %426 = dma.vmem_to_hbm [thread:$0]  %s419, 768, %s421, [#allocation4], 128, 128, 8
    $region41: #{tpu_custom_call.1} parent=1 // pred_fallthru
      _
    // Predicated region
    $region42: #{tpu_custom_call.1} parent=1 // pred_check
      _
    $region43: #{tpu_custom_call.1} parent=1 // pred_check_branch
      %428 = sbr.rel (0) target = $region45
    $region44: #{tpu_custom_call.1} parent=1 // pred_region
      %430 = dma.done [#allocation4], 768
    $region45: #{tpu_custom_call.1} parent=1 // pred_fallthru
      _
    %431 = vsyncpa [#allocation3], 1
    %432 = vsyncpa [#allocation6], 1
    %433 = vsyncpa [#allocation4], 1

</llo_original>
